<compile_context>
chip_gen: v7x
topology: tpu7x:2x2x1
jax: 0.10.0
libtpu: 0.0.40
codegen_flags: <defaults>
</compile_context>

<pallas_src>
import jax
import jax.numpy as jnp
from jax import lax
from jax.experimental import pallas as pl
from jax.experimental.pallas import tpu as pltpu


def _row_roll(m, k):
    """jnp.roll(m, k, axis=0) for a 2-D value, written with explicit slices."""
    n = m.shape[0]
    k = k % n
    if k == 0:
        return m
    return jnp.concatenate([m[n - k:, :], m[:n - k, :]], axis=0)


def _conv_stats_kernel(x_ref, w_ref, yconv_ref, stats_ref):
    # x_ref:     (L, C)       one batch element, native dtype (fed to the MXU as-is)
    # w_ref:     (3, C, Cp)   conv weight, tap-major, output channels zero-padded
    # yconv_ref: (Tc, Cp)     f32 conv output (Tc = L + 2), staged to HBM
    # stats_ref: (2, Cp)      per-channel [sum, sum-of-squares] for this element
    x = x_ref[...]
    w = w_ref[...]
    L = x.shape[0]

    # Three taps on the MXU with f32 accumulation.
    m0 = jnp.dot(x, w[0], preferred_element_type=jnp.float32)
    m1 = jnp.dot(x, w[1], preferred_element_type=jnp.float32)
    m2 = jnp.dot(x, w[2], preferred_element_type=jnp.float32)

    # Circular conv (pad=2, k=3): y[t] = m0[(t-2)%L] + m1[(t-1)%L] + m2[t].
    y_core = m2 + _row_roll(m1, 1) + _row_roll(m0, 2)        # (L, Cp) f32
    # Conv output has L+2 positions; positions L and L+1 repeat positions 0, 1
    # (circular-pad identity), so just re-append them instead of padding x.
    y_full = jnp.concatenate([y_core, y_core[:2, :]], axis=0)  # (Tc, Cp)

    yconv_ref[...] = y_full

    # Single-pass BatchNorm partials (sum, sum of squares) over this element.
    s = jnp.sum(y_full, axis=0, keepdims=True)                 # (1, Cp)
    ss = jnp.sum(y_full * y_full, axis=0, keepdims=True)       # (1, Cp)
    stats_ref[...] = jnp.concatenate([s, ss], axis=0)


def _norm_act_pool_kernel(y_ref, scale_ref, shift_ref, o_ref, pad_ref):
    # y_ref:     (Tc, Cp) f32 conv activations for one batch element
    # scale_ref: (1, Cp)  folded BN scale = gamma * rsqrt(var + eps)
    # shift_ref: (1, Cp)  folded BN shift = beta - mean * scale
    # o_ref:     (Tout, Cp)
    # pad_ref:   (P, Cp)  VMEM scratch, P = 2*Tout + 2, -inf padded pool input
    y = y_ref[...] * scale_ref[...] + shift_ref[...]
    # ELU(alpha=1). exp(min(y,0)) - 1 is used instead of expm1 (expm1 lowering
    # is not guaranteed on Mosaic); abs error vs expm1 is <= 1 ulp of 1.0.
    y = jnp.where(y > 0.0, y, jnp.exp(jnp.minimum(y, 0.0)) - 1.0)

    Tc, Cp = y.shape
    Tout = o_ref.shape[0]
    P = pad_ref.shape[0]

    # pad_ref[i] == pool_input[i - 1]; 1 row of -inf on the left, >=1 on the
    # right (PyTorch max-pool pads with -inf).
    pad_ref[...] = jnp.concatenate(
        [jnp.full((1, Cp), -jnp.inf, jnp.float32),
         y,
         jnp.full((P - 1 - Tc, Cp), -jnp.inf, jnp.float32)],
        axis=0)

    # MaxPool1d(kernel=3, stride=2, padding=1):
    #   out[j] = max(pad[2j], pad[2j+1], pad[2j+2])
    # -> three stride-2 reads + two VPU maxes, no per-window unrolled loop.
    r0 = pad_ref[pl.ds(0, Tout, stride=2), :]
    r1 = pad_ref[pl.ds(1, Tout, stride=2), :]
    r2 = pad_ref[pl.ds(2, Tout, stride=2), :]
    o_ref[...] = jnp.maximum(jnp.maximum(r0, r1), r2).astype(o_ref.dtype)


@jax.jit
def conv_layer_forward(x, weight, bias, gamma, beta):
    """Forward of ConvLayer.

    x:      (B, L, C) channels-last input (same layout the module receives).
    weight: (C, C, 3) torch Conv1d weight (C_out, C_in, k).
    bias:   (C,) torch Conv1d bias — accepted but unused: a per-channel
            constant is exactly cancelled by training-mode BatchNorm.
    gamma, beta: (C,) BatchNorm affine parameters.
    """
    del bias
    B, L, C = x.shape
    if L < 2:
        raise ValueError("circular padding of 2 requires L >= 2")
    Tc = L + 2                         # conv output length
    Tout = (Tc - 1) // 2 + 1           # maxpool(3, 2, pad=1) output length
    Cp = ((C + 127) // 128) * 128      # lane-dense channel count for outputs
    P = 2 * Tout + 2                   # -inf padded pool buffer rows

    # (C_out, C_in, 3) -> (3, C_in, C_out); match MXU input dtype; pad C_out.
    w = jnp.transpose(weight, (2, 1, 0)).astype(x.dtype)
    w = jnp.pad(w, ((0, 0), (0, 0), (0, Cp - C)))
    gamma_p = jnp.pad(gamma.astype(jnp.float32), (0, Cp - C))
    beta_p = jnp.pad(beta.astype(jnp.float32), (0, Cp - C))

    params = pltpu.CompilerParams(
        dimension_semantics=("parallel",),        # batch axis -> both TCs on v7x
        vmem_limit_bytes=48 * 1024 * 1024)

    # ---- pass 1: circular conv + per-channel partial BN statistics ----------
    yconv, stats = pl.pallas_call(
        _conv_stats_kernel,
        grid=(B,),
        in_specs=[
            pl.BlockSpec((None, L, C), lambda i: (i, 0, 0)),
            pl.BlockSpec((3, C, Cp), lambda i: (0, 0, 0)),
        ],
        out_specs=[
            pl.BlockSpec((None, Tc, Cp), lambda i: (i, 0, 0)),
            pl.BlockSpec((None, 2, Cp), lambda i: (i, 0, 0)),
        ],
        out_shape=(
            jax.ShapeDtypeStruct((B, Tc, Cp), jnp.float32),
            jax.ShapeDtypeStruct((B, 2, Cp), jnp.float32),
        ),
        compiler_params=params,
    )(x, w)

    # ---- tiny glue: fold global batch stats + gamma/beta into scale/shift ----
    n = float(B * Tc)
    mean = jnp.sum(stats[:, 0, :], axis=0) / n
    var = jnp.maximum(jnp.sum(stats[:, 1, :], axis=0) / n - mean * mean, 0.0)
    scale = gamma_p * lax.rsqrt(var + 1e-5)
    shift = beta_p - mean * scale
    scale = scale.reshape(1, Cp)
    shift = shift.reshape(1, Cp)

    # ---- pass 2: normalize + ELU + MaxPool(3, 2, 1) ---------------------------
    out = pl.pallas_call(
        _norm_act_pool_kernel,
        grid=(B,),
        in_specs=[
            pl.BlockSpec((None, Tc, Cp), lambda i: (i, 0, 0)),
            pl.BlockSpec((1, Cp), lambda i: (0, 0)),
            pl.BlockSpec((1, Cp), lambda i: (0, 0)),
        ],
        out_specs=pl.BlockSpec((None, Tout, Cp), lambda i: (i, 0, 0)),
        out_shape=jax.ShapeDtypeStruct((B, Tout, Cp), x.dtype),
        scratch_shapes=[pltpu.VMEM((P, Cp), jnp.float32)],
        compiler_params=params,
    )(yconv, scale, shift)

    return out[:, :, :C] if Cp != C else out


@jax.jit
def _reference_forward(x, weight, bias, gamma, beta):
    """Pure-JAX (XLA) reference matching the PyTorch module in training mode."""
    B, L, C = x.shape
    xc = jnp.transpose(x, (0, 2, 1))                                   # (B, C, L)
    xp = jnp.concatenate([xc[..., L - 2:], xc, xc[..., :2]], axis=-1)  # circular pad 2
    y = lax.conv_general_dilated(
        xp, weight, window_strides=(1,), padding="VALID",
        dimension_numbers=("NCH", "OIH", "NCH"),
        precision=lax.Precision.HIGHEST)
    y = y + bias[None, :, None]
    mean = jnp.mean(y, axis=(0, 2), keepdims=True)
    var = jnp.mean((y - mean) ** 2, axis=(0, 2), keepdims=True)
    y = (y - mean) * lax.rsqrt(var + 1e-5)
    y = y * gamma[None, :, None] + beta[None, :, None]
    y = jnp.where(y > 0.0, y, jnp.expm1(y))
    y_pad = jnp.pad(y, ((0, 0), (0, 0), (1, 1)), constant_values=-jnp.inf)
    pooled = lax.reduce_window(y_pad, -jnp.inf, lax.max,
                               (1, 1, 3), (1, 1, 2), "VALID")
    return jnp.transpose(pooled, (0, 2, 1))


if __name__ == "__main__":
    # Small shapes consistent with the module: batch=2, seq_len=8, channels=4.
    B, L, C = 2, 8, 4
    key = jax.random.PRNGKey(0)
    kx, kw, kb, kg, kbe = jax.random.split(key, 5)

    x = jax.random.normal(kx, (B, L, C), dtype=jnp.float32)

    # Deterministic parameter init (shapes follow nn.Conv1d(C, C, 3), BatchNorm1d(C)).
    fan_in = C * 3
    bound = 1.0 / (fan_in ** 0.5)
    weight = jax.random.uniform(kw, (C, C, 3), jnp.float32, -bound, bound)
    bias = jax.random.uniform(kb, (C,), jnp.float32, -bound, bound)
    gamma = 1.0 + 0.1 * jax.random.normal(kg, (C,), jnp.float32)
    beta = 0.1 * jax.random.normal(kbe, (C,), jnp.float32)

    out = conv_layer_forward(x, weight, bias, gamma, beta)
    jax.block_until_ready(out)

    expected_shape = (B, (L + 1) // 2 + 1, C)  # (2, 5, 4)
    assert out.shape == expected_shape, (out.shape, expected_shape)

    ref = _reference_forward(x, weight, bias, gamma, beta)
    jax.block_until_ready(ref)
    assert bool(jnp.allclose(out, ref, rtol=1e-2, atol=1e-2)), "mismatch vs reference"

    print("KERNEL_OK")
</pallas_src>

<mosaic_0001>
module attributes {stable_mosaic.version = 11 : i64} {
  func.func @_conv_stats_kernel(%arg0: i32, %arg1: memref<1x8x4xf32, #tpu.memory_space<vmem>>, %arg2: memref<3x4x128xf32, #tpu.memory_space<vmem>>, %arg3: memref<1x10x128xf32, #tpu.memory_space<vmem>>, %arg4: memref<1x2x128xf32, #tpu.memory_space<vmem>>) attributes {dimension_semantics = [#tpu.dimension_semantics<parallel>], iteration_bounds = array<i64: 2>, scalar_prefetch = 0 : i64, scratch_operands = 0 : i64, tpu.core_type = #tpu.core_type<tc>, window_params = [{transform_indices = @transform_0, window_bounds = array<i64: 1, 8, 4>}, {pipeline_mode = #tpu.pipeline_mode<synchronous>, transform_indices = @transform_1, window_bounds = array<i64: 3, 4, 128>}, {transform_indices = @transform_2, window_bounds = array<i64: 1, 10, 128>}, {transform_indices = @transform_3, window_bounds = array<i64: 1, 2, 128>}]} {
    %c0 = arith.constant 0 : index
    %c0_0 = arith.constant 0 : index
    %c0_1 = arith.constant 0 : index
    %0 = vector.load %arg1[%c0, %c0_0, %c0_1] : memref<1x8x4xf32, #tpu.memory_space<vmem>>, vector<1x8x4xf32>
    %1 = vector.shape_cast %0 : vector<1x8x4xf32> to vector<8x4xf32>
    %c0_2 = arith.constant 0 : index
    %c0_3 = arith.constant 0 : index
    %c0_4 = arith.constant 0 : index
    %2 = vector.load %arg2[%c0_2, %c0_3, %c0_4] : memref<3x4x128xf32, #tpu.memory_space<vmem>>, vector<3x4x128xf32>
    %3 = vector.extract_strided_slice %2 {offsets = [0, 0, 0], sizes = [1, 4, 128], strides = [1, 1, 1]} : vector<3x4x128xf32> to vector<1x4x128xf32>
    %4 = vector.shape_cast %3 : vector<1x4x128xf32> to vector<4x128xf32>
    %cst = arith.constant dense<0.000000e+00> : vector<8x128xf32>
    %5 = tpu.matmul %1, %4, %cst {dimension_numbers = #tpu.dot_dimension_numbers<[1], [0], [0], [1], [0, 0, 1, 1], [], []>} : vector<8x4xf32>, vector<4x128xf32>, vector<8x128xf32> -> vector<8x128xf32>
    %6 = vector.extract_strided_slice %2 {offsets = [1, 0, 0], sizes = [1, 4, 128], strides = [1, 1, 1]} : vector<3x4x128xf32> to vector<1x4x128xf32>
    %7 = vector.shape_cast %6 : vector<1x4x128xf32> to vector<4x128xf32>
    %cst_5 = arith.constant dense<0.000000e+00> : vector<8x128xf32>
    %8 = tpu.matmul %1, %7, %cst_5 {dimension_numbers = #tpu.dot_dimension_numbers<[1], [0], [0], [1], [0, 0, 1, 1], [], []>} : vector<8x4xf32>, vector<4x128xf32>, vector<8x128xf32> -> vector<8x128xf32>
    %9 = vector.extract_strided_slice %2 {offsets = [2, 0, 0], sizes = [1, 4, 128], strides = [1, 1, 1]} : vector<3x4x128xf32> to vector<1x4x128xf32>
    %10 = vector.shape_cast %9 : vector<1x4x128xf32> to vector<4x128xf32>
    %cst_6 = arith.constant dense<0.000000e+00> : vector<8x128xf32>
    %11 = tpu.matmul %1, %10, %cst_6 {dimension_numbers = #tpu.dot_dimension_numbers<[1], [0], [0], [1], [0, 0, 1, 1], [], []>} : vector<8x4xf32>, vector<4x128xf32>, vector<8x128xf32> -> vector<8x128xf32>
    %12 = vector.extract_strided_slice %8 {offsets = [7, 0], sizes = [1, 128], strides = [1, 1]} : vector<8x128xf32> to vector<1x128xf32>
    %13 = vector.extract_strided_slice %8 {offsets = [0, 0], sizes = [7, 128], strides = [1, 1]} : vector<8x128xf32> to vector<7x128xf32>
    %14 = tpu.concatenate %12, %13 in 0 : vector<1x128xf32>, vector<7x128xf32> -> vector<8x128xf32>
    %15 = arith.addf %11, %14 : vector<8x128xf32>
    %16 = vector.extract_strided_slice %5 {offsets = [6, 0], sizes = [2, 128], strides = [1, 1]} : vector<8x128xf32> to vector<2x128xf32>
    %17 = vector.extract_strided_slice %5 {offsets = [0, 0], sizes = [6, 128], strides = [1, 1]} : vector<8x128xf32> to vector<6x128xf32>
    %18 = tpu.concatenate %16, %17 in 0 : vector<2x128xf32>, vector<6x128xf32> -> vector<8x128xf32>
    %19 = arith.addf %15, %18 : vector<8x128xf32>
    %20 = vector.extract_strided_slice %19 {offsets = [0, 0], sizes = [2, 128], strides = [1, 1]} : vector<8x128xf32> to vector<2x128xf32>
    %21 = tpu.concatenate %19, %20 in 0 : vector<8x128xf32>, vector<2x128xf32> -> vector<10x128xf32>
    %c0_7 = arith.constant 0 : index
    %c0_8 = arith.constant 0 : index
    %c0_9 = arith.constant 0 : index
    %22 = vector.load %arg3[%c0_7, %c0_8, %c0_9] : memref<1x10x128xf32, #tpu.memory_space<vmem>>, vector<1x10x128xf32>
    %23 = vector.shape_cast %22 : vector<1x10x128xf32> to vector<10x128xf32>
    %24 = vector.shape_cast %21 : vector<10x128xf32> to vector<1x10x128xf32>
    tpu.vector_store %arg3[%c0_7, %c0_8, %c0_9], %24 {strides = array<i32>} : memref<1x10x128xf32, #tpu.memory_space<vmem>>, vector<1x10x128xf32>,
    %cst_10 = arith.constant dense<0.000000e+00> : vector<128xf32>
    %25 = vector.multi_reduction <add>, %21, %cst_10 [0] : vector<10x128xf32> to vector<128xf32>
    %26 = vector.shape_cast %25 : vector<128xf32> to vector<1x128xf32>
    %27 = arith.mulf %21, %21 : vector<10x128xf32>
    %cst_11 = arith.constant dense<0.000000e+00> : vector<128xf32>
    %28 = vector.multi_reduction <add>, %27, %cst_11 [0] : vector<10x128xf32> to vector<128xf32>
    %29 = vector.shape_cast %28 : vector<128xf32> to vector<1x128xf32>
    %30 = tpu.concatenate %26, %29 in 0 : vector<1x128xf32>, vector<1x128xf32> -> vector<2x128xf32>
    %c0_12 = arith.constant 0 : index
    %c0_13 = arith.constant 0 : index
    %c0_14 = arith.constant 0 : index
    %31 = vector.load %arg4[%c0_12, %c0_13, %c0_14] : memref<1x2x128xf32, #tpu.memory_space<vmem>>, vector<1x2x128xf32>
    %32 = vector.shape_cast %31 : vector<1x2x128xf32> to vector<2x128xf32>
    %33 = vector.shape_cast %30 : vector<2x128xf32> to vector<1x2x128xf32>
    tpu.vector_store %arg4[%c0_12, %c0_13, %c0_14], %33 {strides = array<i32>} : memref<1x2x128xf32, #tpu.memory_space<vmem>>, vector<1x2x128xf32>,
    return
  }
  func.func @transform_0(%arg0: i32) -> (i32, i32, i32) {
    %c0_i32 = arith.constant 0 : i32
    %c0_i32_0 = arith.constant 0 : i32
    %c0_i32_1 = arith.constant 0 : i32
    return %arg0, %c0_i32, %c0_i32_0 : i32, i32, i32
  }
  func.func @transform_1(%arg0: i32) -> (i32, i32, i32) {
    %c0_i32 = arith.constant 0 : i32
    %c0_i32_0 = arith.constant 0 : i32
    %c0_i32_1 = arith.constant 0 : i32
    %c0_i32_2 = arith.constant 0 : i32
    return %c0_i32, %c0_i32_0, %c0_i32_1 : i32, i32, i32
  }
  func.func @transform_2(%arg0: i32) -> (i32, i32, i32) {
    %c0_i32 = arith.constant 0 : i32
    %c0_i32_0 = arith.constant 0 : i32
    %c0_i32_1 = arith.constant 0 : i32
    return %arg0, %c0_i32, %c0_i32_0 : i32, i32, i32
  }
  func.func @transform_3(%arg0: i32) -> (i32, i32, i32) {
    %c0_i32 = arith.constant 0 : i32
    %c0_i32_0 = arith.constant 0 : i32
    %c0_i32_1 = arith.constant 0 : i32
    return %arg0, %c0_i32, %c0_i32_0 : i32, i32, i32
  }
}

module attributes {stable_mosaic.version = 11 : i64} {
  func.func @_norm_act_pool_kernel(%arg0: i32, %arg1: memref<1x10x128xf32, #tpu.memory_space<vmem>>, %arg2: memref<1x128xf32, #tpu.memory_space<vmem>>, %arg3: memref<1x128xf32, #tpu.memory_space<vmem>>, %arg4: memref<1x5x128xf32, #tpu.memory_space<vmem>>, %arg5: memref<12x128xf32, #tpu.memory_space<vmem>>) attributes {dimension_semantics = [#tpu.dimension_semantics<parallel>], iteration_bounds = array<i64: 2>, scalar_prefetch = 0 : i64, scratch_operands = 1 : i64, tpu.core_type = #tpu.core_type<tc>, window_params = [{transform_indices = @transform_0, window_bounds = array<i64: 1, 10, 128>}, {pipeline_mode = #tpu.pipeline_mode<synchronous>, transform_indices = @transform_1, window_bounds = array<i64: 1, 128>}, {pipeline_mode = #tpu.pipeline_mode<synchronous>, transform_indices = @transform_2, window_bounds = array<i64: 1, 128>}, {transform_indices = @transform_3, window_bounds = array<i64: 1, 5, 128>}]} {
    %c0 = arith.constant 0 : index
    %c0_0 = arith.constant 0 : index
    %c0_1 = arith.constant 0 : index
    %0 = vector.load %arg1[%c0, %c0_0, %c0_1] : memref<1x10x128xf32, #tpu.memory_space<vmem>>, vector<1x10x128xf32>
    %1 = vector.shape_cast %0 : vector<1x10x128xf32> to vector<10x128xf32>
    %c0_2 = arith.constant 0 : index
    %c0_3 = arith.constant 0 : index
    %2 = vector.load %arg2[%c0_2, %c0_3] : memref<1x128xf32, #tpu.memory_space<vmem>>, vector<1x128xf32>
    %3 = vector.broadcast %2 : vector<1x128xf32> to vector<10x128xf32>
    %4 = arith.mulf %1, %3 : vector<10x128xf32>
    %c0_4 = arith.constant 0 : index
    %c0_5 = arith.constant 0 : index
    %5 = vector.load %arg3[%c0_4, %c0_5] : memref<1x128xf32, #tpu.memory_space<vmem>>, vector<1x128xf32>
    %6 = vector.broadcast %5 : vector<1x128xf32> to vector<10x128xf32>
    %7 = arith.addf %4, %6 : vector<10x128xf32>
    %cst = arith.constant 0.000000e+00 : f32
    %8 = vector.broadcast %cst : f32 to vector<10x128xf32>
    %9 = arith.cmpf ogt, %7, %8 : vector<10x128xf32>
    %cst_6 = arith.constant 0.000000e+00 : f32
    %10 = vector.broadcast %cst_6 : f32 to vector<10x128xf32>
    %11 = arith.minimumf %7, %10 : vector<10x128xf32>
    %12 = math.exp %11 : vector<10x128xf32>
    %cst_7 = arith.constant 1.000000e+00 : f32
    %13 = vector.broadcast %cst_7 : f32 to vector<10x128xf32>
    %14 = arith.subf %12, %13 : vector<10x128xf32>
    %15 = arith.select %9, %7, %14 : vector<10x128xi1>, vector<10x128xf32>
    %cst_8 = arith.constant 0xFF800000 : f32
    %16 = vector.broadcast %cst_8 : f32 to vector<1x128xf32>
    %cst_9 = arith.constant 0xFF800000 : f32
    %17 = vector.broadcast %cst_9 : f32 to vector<1x128xf32>
    %18 = tpu.concatenate %16, %15, %17 in 0 : vector<1x128xf32>, vector<10x128xf32>, vector<1x128xf32> -> vector<12x128xf32>
    %c0_10 = arith.constant 0 : index
    %c0_11 = arith.constant 0 : index
    %19 = vector.load %arg5[%c0_10, %c0_11] : memref<12x128xf32, #tpu.memory_space<vmem>>, vector<12x128xf32>
    tpu.vector_store %arg5[%c0_10, %c0_11], %18 {strides = array<i32>} : memref<12x128xf32, #tpu.memory_space<vmem>>, vector<12x128xf32>,
    %c0_12 = arith.constant 0 : index
    %c0_13 = arith.constant 0 : index
    %20 = tpu.strided_load %arg5[%c0_12, %c0_13] {strides = array<i32: 2, 1>} : memref<12x128xf32, #tpu.memory_space<vmem>>, vector<5x128xf32>
    %c1 = arith.constant 1 : index
    %c0_14 = arith.constant 0 : index
    %21 = tpu.strided_load %arg5[%c1, %c0_14] {strides = array<i32: 2, 1>} : memref<12x128xf32, #tpu.memory_space<vmem>>, vector<5x128xf32>
    %c2 = arith.constant 2 : index
    %c0_15 = arith.constant 0 : index
    %22 = tpu.strided_load %arg5[%c2, %c0_15] {strides = array<i32: 2, 1>} : memref<12x128xf32, #tpu.memory_space<vmem>>, vector<5x128xf32>
    %23 = arith.maximumf %20, %21 : vector<5x128xf32>
    %24 = arith.maximumf %23, %22 : vector<5x128xf32>
    %c0_16 = arith.constant 0 : index
    %c0_17 = arith.constant 0 : index
    %c0_18 = arith.constant 0 : index
    %25 = vector.load %arg4[%c0_16, %c0_17, %c0_18] : memref<1x5x128xf32, #tpu.memory_space<vmem>>, vector<1x5x128xf32>
    %26 = vector.shape_cast %25 : vector<1x5x128xf32> to vector<5x128xf32>
    %27 = vector.shape_cast %24 : vector<5x128xf32> to vector<1x5x128xf32>
    tpu.vector_store %arg4[%c0_16, %c0_17, %c0_18], %27 {strides = array<i32>} : memref<1x5x128xf32, #tpu.memory_space<vmem>>, vector<1x5x128xf32>,
    return
  }
  func.func @transform_0(%arg0: i32) -> (i32, i32, i32) {
    %c0_i32 = arith.constant 0 : i32
    %c0_i32_0 = arith.constant 0 : i32
    %c0_i32_1 = arith.constant 0 : i32
    return %arg0, %c0_i32, %c0_i32_0 : i32, i32, i32
  }
  func.func @transform_1(%arg0: i32) -> (i32, i32) {
    %c0_i32 = arith.constant 0 : i32
    %c0_i32_0 = arith.constant 0 : i32
    %c0_i32_1 = arith.constant 0 : i32
    return %c0_i32, %c0_i32_0 : i32, i32
  }
  func.func @transform_2(%arg0: i32) -> (i32, i32) {
    %c0_i32 = arith.constant 0 : i32
    %c0_i32_0 = arith.constant 0 : i32
    %c0_i32_1 = arith.constant 0 : i32
    return %c0_i32, %c0_i32_0 : i32, i32
  }
  func.func @transform_3(%arg0: i32) -> (i32, i32, i32) {
    %c0_i32 = arith.constant 0 : i32
    %c0_i32_0 = arith.constant 0 : i32
    %c0_i32_1 = arith.constant 0 : i32
    return %arg0, %c0_i32, %c0_i32_0 : i32, i32, i32
  }
}

</mosaic_0001>

<llo_original>
// kernel: conv_layer_forward.2
$region0: #{conv_layer_forward.2}
  #allocation0 [shape = 'u32[]', space=smem, size = 0x4, offset = 0x4, fixed_abs, tag = 'smem constant byte address 0x4 - core index']
  #allocation1 [shape = 'u32[144,128]{1,0:T(1,128)}', space=vmem, size = 0x12000, scoped, tag = 'internal scratch']
  %s0 = inlined_call_operand.vmem [shape: f32[2,8,4], index: 0, kind: input, shape index: {}]
  %s1 = inlined_call_operand.vmem [shape: f32[3,4,128], index: 1, kind: input, shape index: {}]
  %s2 = inlined_call_operand.vmem [shape: f32[2,10,128], index: 2, kind: output, shape index: {0}]
  %s3 = inlined_call_operand.vmem [shape: f32[2,2,128], index: 3, kind: output, shape index: {1}]
  %4 = xla_tuple %s2, %s3
  %s5 = sld [smem:[#allocation0]]
  $region49: #{conv_layer_forward.2} parent=0
    _
  %s7 = ssub.s32 1, %s5
  %s8 = scalar_select 0, %s7, %s5
  loop: start=0, step=1, limit=4
  $region2: #{conv_layer_forward.2} parent=0 // loop_pre_header
    _
  $region3: #{conv_layer_forward.2} parent=0 // loop_header
    %s10 = sphi 0, %s14
    %p11 = scmp.ge.s32.totalorder %s10, 4
    %s20 = sphi 0, %s22
    %s23 = sphi 0, %s20
    %s24 = sphi 0, %s23
    %s40 = sphi 0, %s24
    %s44 = sphi 0, %s44
    %s46 = sphi 0, %s44
    %s47 = sphi 0, %s46
    %s61 = sphi 0, %s47
    %s67 = sphi 0, %s69
    %s70 = sphi 0, %s67
    %s71 = sphi 0, %s70
    %s87 = sphi 0, %s71
    %s93 = sphi 0, %s95
    %s96 = sphi 0, %s93
    %s97 = sphi 0, %s96
    %s113 = sphi 0, %s97
  $region4: #{conv_layer_forward.2} parent=0 // loop_header_branch
    %13 = sbr.rel (%p11) target = $region8
  $region5: #{conv_layer_forward.2} parent=0 // loop_body
    %s15 = ssub.s32 %s10, 1
    %s16 = ssub.s32 %s10, 2
    %s17 = sadd.s32 %s10, 1
    %s18 = ssub.s32 %s10, %s17
    %p19 = scmp.eq.s32.totalorder %s18, 0
    %s21 = sadd.s32 %s20, 1
    %s22 = scalar_select %p19, %s20, %s21
    %p25 = pneg %p19
    %p26 = scmp.eq.s32.totalorder %s10, 1
    %p27 = por %p25, %p26
    %p28 = scmp.ne.s32.totalorder %s20, %s23
    %p29 = scmp.eq.s32.totalorder %s10, 0
    %p30 = por %p28, %p29
    %p31 = scmp.ne.s32.totalorder %s20, %s23
    %p32 = scmp.eq.s32.totalorder %s15, 1
    %p33 = por %p31, %p32
    %p34 = scmp.ne.s32.totalorder %s23, %s24
    %p35 = scmp.eq.s32.totalorder %s15, 0
    %p36 = por %p34, %p35
    %p37 = scmp.ne.s32.totalorder %s23, %s24
    %p38 = scmp.eq.s32.totalorder %s16, 1
    %p39 = por %p37, %p38
    %p41 = scmp.ne.s32.totalorder %s24, %s40
    %p42 = scmp.eq.s32.totalorder %s16, 0
    %p43 = por %p41, %p42
    %s45 = sadd.s32 %s44, 1
    %p48 = scmp.eq.s32.totalorder %s10, 1
    %p49 = scmp.ne.s32.totalorder %s44, %s46
    %p50 = scmp.eq.s32.totalorder %s10, 0
    %p51 = por %p49, %p50
    %p52 = scmp.ne.s32.totalorder %s44, %s46
    %p53 = scmp.eq.s32.totalorder %s15, 1
    %p54 = por %p52, %p53
    %p55 = scmp.ne.s32.totalorder %s46, %s47
    %p56 = scmp.eq.s32.totalorder %s15, 0
    %p57 = por %p55, %p56
    %p58 = scmp.ne.s32.totalorder %s46, %s47
    %p59 = scmp.eq.s32.totalorder %s16, 1
    %p60 = por %p58, %p59
    %p62 = scmp.ne.s32.totalorder %s47, %s61
    %p63 = scmp.eq.s32.totalorder %s16, 0
    %p64 = por %p62, %p63
    %s65 = ssub.s32 %s10, %s17
    %p66 = scmp.eq.s32.totalorder %s65, 0
    %s68 = sadd.s32 %s67, 1
    %s69 = scalar_select %p66, %s67, %s68
    %p72 = pneg %p66
    %p73 = scmp.eq.s32.totalorder %s10, 1
    %p74 = por %p72, %p73
    %p75 = scmp.ne.s32.totalorder %s67, %s70
    %p76 = scmp.eq.s32.totalorder %s10, 0
    %p77 = por %p75, %p76
    %p78 = scmp.ne.s32.totalorder %s67, %s70
    %p79 = scmp.eq.s32.totalorder %s15, 1
    %p80 = por %p78, %p79
    %p81 = scmp.ne.s32.totalorder %s70, %s71
    %p82 = scmp.eq.s32.totalorder %s15, 0
    %p83 = por %p81, %p82
    %p84 = scmp.ne.s32.totalorder %s70, %s71
    %p85 = scmp.eq.s32.totalorder %s16, 1
    %p86 = por %p84, %p85
    %p88 = scmp.ne.s32.totalorder %s71, %s87
    %p89 = scmp.eq.s32.totalorder %s16, 0
    %p90 = por %p88, %p89
    %s91 = ssub.s32 %s10, %s17
    %p92 = scmp.eq.s32.totalorder %s91, 0
    %s94 = sadd.s32 %s93, 1
    %s95 = scalar_select %p92, %s93, %s94
    %p98 = pneg %p92
    %p99 = scmp.eq.s32.totalorder %s10, 1
    %p100 = por %p98, %p99
    %p101 = scmp.ne.s32.totalorder %s93, %s96
    %p102 = scmp.eq.s32.totalorder %s10, 0
    %p103 = por %p101, %p102
    %p104 = scmp.ne.s32.totalorder %s93, %s96
    %p105 = scmp.eq.s32.totalorder %s15, 1
    %p106 = por %p104, %p105
    %p107 = scmp.ne.s32.totalorder %s96, %s97
    %p108 = scmp.eq.s32.totalorder %s15, 0
    %p109 = por %p107, %p108
    %p110 = scmp.ne.s32.totalorder %s96, %s97
    %p111 = scmp.eq.s32.totalorder %s16, 1
    %p112 = por %p110, %p111
    %p114 = scmp.ne.s32.totalorder %s97, %s113
    %p115 = scmp.eq.s32.totalorder %s16, 0
    %p116 = por %p114, %p115
    %p117 = scmp.le.s32.totalorder 1, %s10
    %p118 = scmp.lt.s32.totalorder %s10, 3
    %p119 = pnand %p117, %p118
    %p120 = pneg %p119
    // Predicated region
    $region9: #{conv_layer_forward.2} parent=5 // pred_check
      _
    $region10: #{conv_layer_forward.2} parent=5 // pred_check_branch
      %122 = sbr.rel (%p119) target = $region12
    $region11: #{conv_layer_forward.2} parent=5 // pred_region
      %s123 = ssub.s32 %s10, 1
      // Predicated region
      $region13: #{conv_layer_forward.2} parent=11 // pred_check
        %p124 = pneg %p57
      $region14: #{conv_layer_forward.2} parent=11 // pred_check_branch
        %126 = sbr.rel (%p124) target = $region16
      $region15: #{conv_layer_forward.2} parent=11 // pred_region
        _
      $region16: #{conv_layer_forward.2} parent=11 // pred_fallthru
        _
    $region12: #{conv_layer_forward.2} parent=5 // pred_fallthru
      _
    %p127 = scmp.lt.s32.totalorder %s10, 2
    // Predicated region
    $region17: #{conv_layer_forward.2} parent=5 // pred_check
      %p128 = pneg %p127
    $region18: #{conv_layer_forward.2} parent=5 // pred_check_branch
      %130 = sbr.rel (%p128) target = $region20
    $region19: #{conv_layer_forward.2} parent=5 // pred_region
      // Predicated region
      $region21: #{conv_layer_forward.2} parent=19 // pred_check
        %p131 = pneg %p30
      $region22: #{conv_layer_forward.2} parent=19 // pred_check_branch
        %133 = sbr.rel (%p131) target = $region24
      $region23: #{conv_layer_forward.2} parent=19 // pred_region
        %p134 = scmp.lt.s32.totalorder %s10, 1
        %s135 = scalar_select %p134, %s10, 1
        %s136 = smul.addr %s135, 8
        %s137 = scalar_lea.vmem %s0, %s136
      $region24: #{conv_layer_forward.2} parent=19 // pred_fallthru
        _
    $region20: #{conv_layer_forward.2} parent=5 // pred_fallthru
      _
    %p138 = scmp.le.s32.totalorder 1, %s10
    %p139 = scmp.lt.s32.totalorder %s10, 3
    %p140 = pnand %p138, %p139
    %p141 = pneg %p140
    // Predicated region
    $region25: #{conv_layer_forward.2} parent=5 // pred_check
      _
    $region26: #{conv_layer_forward.2} parent=5 // pred_check_branch
      %143 = sbr.rel (%p140) target = $region28
    $region27: #{conv_layer_forward.2} parent=5 // pred_region
      %s144 = ssub.s32 %s10, 1
      %p145 = scmp.lt.s32.totalorder %s15, 1
      %s146 = scalar_select %p145, %s15, 1
      %s147 = smul.addr %s146, 8
      %s148 = scalar_lea.vmem %s0, %s147
      %p149 = pneg %p36
      %p150 = pneg %p33
      %p151 = pneg %p57
      %p152 = pneg %p54
      %p153 = pneg %p83
      %p154 = pneg %p80
      %p155 = scmp.lt.s32.totalorder %s15, 1
      %s156 = scalar_select %p155, %s15, 1
      %s157 = smul.addr %s156, 2
      %s158 = smul.addr %s157, 8
      %s159 = scalar_lea.vmem %s2, %s158
      %p160 = pneg %p109
      %p161 = pneg %p106
      %p162 = scmp.lt.s32.totalorder %s15, 1
      %s163 = scalar_select %p162, %s15, 1
      %s164 = smul.addr %s163, 2
      %s165 = scalar_lea.vmem %s3, %s164
      %p166 = scmp.lt.s32.totalorder %s15, 1
      %s167 = scalar_select %p166, %s15, 1
      %s168 = smul.addr %s167, 8
      %s169 = scalar_lea.vmem %s0, %s168
      %p170 = scmp.lt.s32.totalorder %s15, 1
      %s171 = scalar_select %p170, %s15, 1
      %s172 = smul.addr %s171, 2
      %s173 = smul.addr %s172, 8
      %s174 = scalar_lea.vmem %s2, %s173
      %p175 = scmp.lt.s32.totalorder %s15, 1
      %s176 = scalar_select %p175, %s15, 1
      %s177 = smul.addr %s176, 2
      %s178 = scalar_lea.vmem %s3, %s177
      %v179 = vld [vmem:[%s169] sm:$0xff]
      %v180 = vld [vmem:[%s1] sm:$0xf]
      %v181 = vld [vmem:[%s1 + $0x4] sm:$0xf]
      %v182 = vld [vmem:[%s1 + $0x8] sm:$0xf]
      %vm183 = vcmask 31744
      %v185 = vsel %vm183, %v179, 0
      %vm187 = vcmask 1043456
      %v189 = vsel %vm187, %v180, 0
      %191 = vmatprep.subr.mxu0 0.0
      %192 = vmatpush1.msra.mxu0 %v189
      %193 = vmatprep.subr.mxu0 0.0
      %194 = vmatpush1.msra.mxu0 0.0
      %195 = vmatprep.subr.mxu0 0.0
      %196 = vmatpush1.msra.mxu0 0.0
      %197 = vmatprep.subr.mxu0 0.0
      %198 = vmatpush1.msra.mxu0 0.0
      %199 = vmatprep.subr.mxu0 0.0
      %200 = vmatpush1.msra.mxu0 0.0
      %201 = vmatprep.subr.mxu0 0.0
      %202 = vmatpush1.msra.mxu0 0.0
      %203 = vmatprep.subr.mxu0 0.0
      %204 = vmatpush1.msra.mxu0 0.0
      %205 = vmatprep.subr.mxu0 0.0
      %206 = vmatpush1.msra.mxu0 0.0
      %207 = vmatprep.subr.mxu0 0.0
      %208 = vmatpush1.msra.mxu0 0.0
      %209 = vmatprep.subr.mxu0 0.0
      %210 = vmatpush1.msra.mxu0 0.0
      %211 = vmatprep.subr.mxu0 0.0
      %212 = vmatpush1.msra.mxu0 0.0
      %213 = vmatprep.subr.mxu0 0.0
      %214 = vmatpush1.msra.mxu0 0.0
      %215 = vmatprep.subr.mxu0 0.0
      %216 = vmatpush1.msra.mxu0 0.0
      %217 = vmatprep.subr.mxu0 0.0
      %218 = vmatpush1.msra.mxu0 0.0
      %219 = vmatprep.subr.mxu0 0.0
      %220 = vmatpush1.msra.mxu0 0.0
      %221 = vmatprep.subr.mxu0 0.0
      %222 = vmatpush1.msra.mxu0 0.0
      %223 = vmatprep.subr.mxu0 0.0
      %224 = vmatpush1.msra.mxu0 0.0
      %225 = vmatprep.subr.mxu0 0.0
      %226 = vmatpush1.msra.mxu0 0.0
      %227 = vmatprep.subr.mxu0 0.0
      %228 = vmatpush1.msra.mxu0 0.0
      %229 = vmatprep.subr.mxu0 0.0
      %230 = vmatpush1.msra.mxu0 0.0
      %231 = vmatprep.subr.mxu0 0.0
      %232 = vmatpush1.msra.mxu0 0.0
      %233 = vmatprep.subr.mxu0 0.0
      %234 = vmatpush1.msra.mxu0 0.0
      %235 = vmatprep.subr.mxu0 0.0
      %236 = vmatpush1.msra.mxu0 0.0
      %237 = vmatprep.subr.mxu0 0.0
      %238 = vmatpush1.msra.mxu0 0.0
      %239 = vmatprep.subr.mxu0 0.0
      %240 = vmatpush1.msra.mxu0 0.0
      %241 = vmatprep.subr.mxu0 0.0
      %242 = vmatpush1.msra.mxu0 0.0
      %243 = vmatprep.subr.mxu0 0.0
      %244 = vmatpush1.msra.mxu0 0.0
      %245 = vmatprep.subr.mxu0 0.0
      %246 = vmatpush1.msra.mxu0 0.0
      %247 = vmatprep.subr.mxu0 0.0
      %248 = vmatpush1.msra.mxu0 0.0
      %249 = vmatprep.subr.mxu0 0.0
      %250 = vmatpush1.msra.mxu0 0.0
      %251 = vmatprep.subr.mxu0 0.0
      %252 = vmatpush1.msra.mxu0 0.0
      %253 = vmatprep.subr.mxu0 0.0
      %254 = vmatpush1.msra.mxu0 0.0
      %255 = vmatprep.mubr.f32.mxu0 0.0
      %256 = vmatmul.mubr.f32.gmra.mrb[0].mxu0 %v185
      %v257 = vpop.f32.mrb[0].mxu0
      %v258 = vadd.f32 0.0, %v257
      %v259 = vpop.f32.mrb[0].mxu0
      %260 = vdwg.mxu0
      %v262 = vsel %vm187, %v181, 0
      %264 = vmatprep.subr.mxu0 0.0
      %265 = vmatpush1.msra.mxu0 %v262
      %266 = vmatprep.subr.mxu0 0.0
      %267 = vmatpush1.msra.mxu0 0.0
      %268 = vmatprep.subr.mxu0 0.0
      %269 = vmatpush1.msra.mxu0 0.0
      %270 = vmatprep.subr.mxu0 0.0
      %271 = vmatpush1.msra.mxu0 0.0
      %272 = vmatprep.subr.mxu0 0.0
      %273 = vmatpush1.msra.mxu0 0.0
      %274 = vmatprep.subr.mxu0 0.0
      %275 = vmatpush1.msra.mxu0 0.0
      %276 = vmatprep.subr.mxu0 0.0
      %277 = vmatpush1.msra.mxu0 0.0
      %278 = vmatprep.subr.mxu0 0.0
      %279 = vmatpush1.msra.mxu0 0.0
      %280 = vmatprep.subr.mxu0 0.0
      %281 = vmatpush1.msra.mxu0 0.0
      %282 = vmatprep.subr.mxu0 0.0
      %283 = vmatpush1.msra.mxu0 0.0
      %284 = vmatprep.subr.mxu0 0.0
      %285 = vmatpush1.msra.mxu0 0.0
      %286 = vmatprep.subr.mxu0 0.0
      %287 = vmatpush1.msra.mxu0 0.0
      %288 = vmatprep.subr.mxu0 0.0
      %289 = vmatpush1.msra.mxu0 0.0
      %290 = vmatprep.subr.mxu0 0.0
      %291 = vmatpush1.msra.mxu0 0.0
      %292 = vmatprep.subr.mxu0 0.0
      %293 = vmatpush1.msra.mxu0 0.0
      %294 = vmatprep.subr.mxu0 0.0
      %295 = vmatpush1.msra.mxu0 0.0
      %296 = vmatprep.subr.mxu0 0.0
      %297 = vmatpush1.msra.mxu0 0.0
      %298 = vmatprep.subr.mxu0 0.0
      %299 = vmatpush1.msra.mxu0 0.0
      %300 = vmatprep.subr.mxu0 0.0
      %301 = vmatpush1.msra.mxu0 0.0
      %302 = vmatprep.subr.mxu0 0.0
      %303 = vmatpush1.msra.mxu0 0.0
      %304 = vmatprep.subr.mxu0 0.0
      %305 = vmatpush1.msra.mxu0 0.0
      %306 = vmatprep.subr.mxu0 0.0
      %307 = vmatpush1.msra.mxu0 0.0
      %308 = vmatprep.subr.mxu0 0.0
      %309 = vmatpush1.msra.mxu0 0.0
      %310 = vmatprep.subr.mxu0 0.0
      %311 = vmatpush1.msra.mxu0 0.0
      %312 = vmatprep.subr.mxu0 0.0
      %313 = vmatpush1.msra.mxu0 0.0
      %314 = vmatprep.subr.mxu0 0.0
      %315 = vmatpush1.msra.mxu0 0.0
      %316 = vmatprep.subr.mxu0 0.0
      %317 = vmatpush1.msra.mxu0 0.0
      %318 = vmatprep.subr.mxu0 0.0
      %319 = vmatpush1.msra.mxu0 0.0
      %320 = vmatprep.subr.mxu0 0.0
      %321 = vmatpush1.msra.mxu0 0.0
      %322 = vmatprep.subr.mxu0 0.0
      %323 = vmatpush1.msra.mxu0 0.0
      %324 = vmatprep.subr.mxu0 0.0
      %325 = vmatpush1.msra.mxu0 0.0
      %326 = vmatprep.subr.mxu0 0.0
      %327 = vmatpush1.msra.mxu0 0.0
      %328 = vmatprep.mubr.f32.mxu0 0.0
      %329 = vmatmul.mubr.f32.gmra.mrb[0].mxu0 %v185
      %v330 = vpop.f32.mrb[0].mxu0
      %v331 = vadd.f32 0.0, %v330
      %v332 = vpop.f32.mrb[0].mxu0
      %333 = vdwg.mxu0
      %v335 = vrot.slane %v331, 7
      %vm337 = vcmask 1040384
      %v338 = vsel %vm337, %v335, %v335
      %v340 = vsel %vm187, %v182, 0
      %342 = vmatprep.subr.mxu0 0.0
      %343 = vmatpush1.msra.mxu0 %v340
      %344 = vmatprep.subr.mxu0 0.0
      %345 = vmatpush1.msra.mxu0 0.0
      %346 = vmatprep.subr.mxu0 0.0
      %347 = vmatpush1.msra.mxu0 0.0
      %348 = vmatprep.subr.mxu0 0.0
      %349 = vmatpush1.msra.mxu0 0.0
      %350 = vmatprep.subr.mxu0 0.0
      %351 = vmatpush1.msra.mxu0 0.0
      %352 = vmatprep.subr.mxu0 0.0
      %353 = vmatpush1.msra.mxu0 0.0
      %354 = vmatprep.subr.mxu0 0.0
      %355 = vmatpush1.msra.mxu0 0.0
      %356 = vmatprep.subr.mxu0 0.0
      %357 = vmatpush1.msra.mxu0 0.0
      %358 = vmatprep.subr.mxu0 0.0
      %359 = vmatpush1.msra.mxu0 0.0
      %360 = vmatprep.subr.mxu0 0.0
      %361 = vmatpush1.msra.mxu0 0.0
      %362 = vmatprep.subr.mxu0 0.0
      %363 = vmatpush1.msra.mxu0 0.0
      %364 = vmatprep.subr.mxu0 0.0
      %365 = vmatpush1.msra.mxu0 0.0
      %366 = vmatprep.subr.mxu0 0.0
      %367 = vmatpush1.msra.mxu0 0.0
      %368 = vmatprep.subr.mxu0 0.0
      %369 = vmatpush1.msra.mxu0 0.0
      %370 = vmatprep.subr.mxu0 0.0
      %371 = vmatpush1.msra.mxu0 0.0
      %372 = vmatprep.subr.mxu0 0.0
      %373 = vmatpush1.msra.mxu0 0.0
      %374 = vmatprep.subr.mxu0 0.0
      %375 = vmatpush1.msra.mxu0 0.0
      %376 = vmatprep.subr.mxu0 0.0
      %377 = vmatpush1.msra.mxu0 0.0
      %378 = vmatprep.subr.mxu0 0.0
      %379 = vmatpush1.msra.mxu0 0.0
      %380 = vmatprep.subr.mxu0 0.0
      %381 = vmatpush1.msra.mxu0 0.0
      %382 = vmatprep.subr.mxu0 0.0
      %383 = vmatpush1.msra.mxu0 0.0
      %384 = vmatprep.subr.mxu0 0.0
      %385 = vmatpush1.msra.mxu0 0.0
      %386 = vmatprep.subr.mxu0 0.0
      %387 = vmatpush1.msra.mxu0 0.0
      %388 = vmatprep.subr.mxu0 0.0
      %389 = vmatpush1.msra.mxu0 0.0
      %390 = vmatprep.subr.mxu0 0.0
      %391 = vmatpush1.msra.mxu0 0.0
      %392 = vmatprep.subr.mxu0 0.0
      %393 = vmatpush1.msra.mxu0 0.0
      %394 = vmatprep.subr.mxu0 0.0
      %395 = vmatpush1.msra.mxu0 0.0
      %396 = vmatprep.subr.mxu0 0.0
      %397 = vmatpush1.msra.mxu0 0.0
      %398 = vmatprep.subr.mxu0 0.0
      %399 = vmatpush1.msra.mxu0 0.0
      %400 = vmatprep.subr.mxu0 0.0
      %401 = vmatpush1.msra.mxu0 0.0
      %402 = vmatprep.subr.mxu0 0.0
      %403 = vmatpush1.msra.mxu0 0.0
      %404 = vmatprep.subr.mxu0 0.0
      %405 = vmatpush1.msra.mxu0 0.0
      %406 = vmatprep.mubr.f32.mxu0 0.0
      %407 = vmatmul.mubr.f32.gmra.mrb[0].mxu0 %v185
      %v408 = vpop.f32.mrb[0].mxu0
      %v409 = vadd.f32 %v338, %v408
      %v410 = vpop.f32.mrb[0].mxu0
      %411 = vdwg.mxu0
      %v413 = vrot.slane %v258, 6
      %vm415 = vcmask 1041408
      %v416 = vsel %vm415, %v413, %v413
      %v417 = vadd.f32 %v409, %v416
      %418 = vst [vmem:[%s174] sm:$0xff] %v417
      %419 = vst [vmem:[%s174 + $0x8] sm:$0x3] %v417
      %v420 = vsel %vm415, %v417, 0.0
      %v421 = vadd.f32 %v417, %v420
      %v422 = vrot.slane %v421, 4
      %v423 = vadd.f32 %v421, %v422
      %v424 = vrot.slane %v423, 2
      %v425 = vadd.f32 %v423, %v424
      %v426 = vrot.slane %v425, 1
      %v427 = vadd.f32 %v425, %v426
      %v428 = vmul.f32 %v417, %v417
      %v429 = vsel %vm415, %v428, 0.0
      %v430 = vadd.f32 %v428, %v429
      %v431 = vrot.slane %v430, 4
      %v432 = vadd.f32 %v430, %v431
      %v433 = vrot.slane %v432, 2
      %v434 = vadd.f32 %v432, %v433
      %v435 = vrot.slane %v434, 1
      %v436 = vadd.f32 %v434, %v435
      %v437 = vsel %vm337, %v427, %v436
      %438 = vst [vmem:[%s178] sm:$0x3] %v437
      %p439 = scmp.lt.s32.totalorder %s15, 1
      %s440 = scalar_select %p439, %s15, 1
      %s441 = smul.addr %s440, 2
      %s442 = smul.addr %s441, 8
      %s443 = scalar_lea.vmem %s2, %s442
      %p444 = scmp.lt.s32.totalorder %s15, 1
      %s445 = scalar_select %p444, %s15, 1
      %s446 = smul.addr %s445, 2
      %s447 = scalar_lea.vmem %s3, %s446
      // Predicated region
      $region29: #{conv_layer_forward.2} parent=27 // pred_check
        %p448 = pneg %p80
      $region30: #{conv_layer_forward.2} parent=27 // pred_check_branch
        %450 = sbr.rel (%p448) target = $region32
      $region31: #{conv_layer_forward.2} parent=27 // pred_region
        _
      $region32: #{conv_layer_forward.2} parent=27 // pred_fallthru
        _
      // Predicated region
      $region33: #{conv_layer_forward.2} parent=27 // pred_check
        %p451 = pneg %p106
      $region34: #{conv_layer_forward.2} parent=27 // pred_check_branch
        %453 = sbr.rel (%p451) target = $region36
      $region35: #{conv_layer_forward.2} parent=27 // pred_region
        _
      $region36: #{conv_layer_forward.2} parent=27 // pred_fallthru
        _
    $region28: #{conv_layer_forward.2} parent=5 // pred_fallthru
      _
    %p454 = scmp.le.s32.totalorder 2, %s10
    // Predicated region
    $region37: #{conv_layer_forward.2} parent=5 // pred_check
      %p455 = pneg %p454
    $region38: #{conv_layer_forward.2} parent=5 // pred_check_branch
      %457 = sbr.rel (%p455) target = $region40
    $region39: #{conv_layer_forward.2} parent=5 // pred_region
      %s458 = ssub.s32 %s10, 2
      // Predicated region
      $region41: #{conv_layer_forward.2} parent=39 // pred_check
        %p459 = pneg %p86
      $region42: #{conv_layer_forward.2} parent=39 // pred_check_branch
        %461 = sbr.rel (%p459) target = $region44
      $region43: #{conv_layer_forward.2} parent=39 // pred_region
        %p462 = scmp.lt.s32.totalorder %s16, 1
        %s463 = scalar_select %p462, %s16, 1
        %s464 = smul.addr %s463, 2
        %s465 = smul.addr %s464, 8
        %s466 = scalar_lea.vmem %s2, %s465
      $region44: #{conv_layer_forward.2} parent=39 // pred_fallthru
        _
      // Predicated region
      $region45: #{conv_layer_forward.2} parent=39 // pred_check
        %p467 = pneg %p112
      $region46: #{conv_layer_forward.2} parent=39 // pred_check_branch
        %469 = sbr.rel (%p467) target = $region48
      $region47: #{conv_layer_forward.2} parent=39 // pred_region
        %p470 = scmp.lt.s32.totalorder %s16, 1
        %s471 = scalar_select %p470, %s16, 1
        %s472 = smul.addr %s471, 2
        %s473 = scalar_lea.vmem %s3, %s472
      $region48: #{conv_layer_forward.2} parent=39 // pred_fallthru
        _
    $region40: #{conv_layer_forward.2} parent=5 // pred_fallthru
      _
  $region6: #{conv_layer_forward.2} parent=0 // loop_footer
    %s14 = sadd.s32 1, %s10
  $region7: #{conv_layer_forward.2} parent=0 // loop_footer_branch
    %9 = sbr.rel target = $region3
  $region8: #{conv_layer_forward.2} parent=0 // loop_exit
    _

// kernel: conv_layer_forward.3
$region0: #{conv_layer_forward.3}
  #allocation0 [shape = 'u32[]', space=smem, size = 0x4, offset = 0x4, fixed_abs, tag = 'smem constant byte address 0x4 - core index']
  #allocation1 [shape = 'u32[144,128]{1,0:T(1,128)}', space=vmem, size = 0x12000, scoped, tag = 'internal scratch']
  #allocation2 [shape = 'f32[12,128]{1,0:T(8,128)}', space=vmem, size = 0x2000, scoped, tag = 'scratch operand']
  %s0 = inlined_call_operand.vmem [shape: f32[2,10,128], index: 0, kind: input, shape index: {}]
  %s1 = inlined_call_operand.vmem [shape: f32[1,128], index: 1, kind: input, shape index: {}]
  %s2 = inlined_call_operand.vmem [shape: f32[1,128], index: 2, kind: input, shape index: {}]
  %s3 = inlined_call_operand.vmem [shape: f32[2,5,128], index: 3, kind: output, shape index: {}]
  %s4 = sld [smem:[#allocation0]]
  $region45: #{conv_layer_forward.3} parent=0
    _
  %s6 = ssub.s32 1, %s4
  %s7 = scalar_select 0, %s6, %s4
  loop: start=0, step=1, limit=4
  $region2: #{conv_layer_forward.3} parent=0 // loop_pre_header
    _
  $region3: #{conv_layer_forward.3} parent=0 // loop_header
    %s9 = sphi 0, %s13
    %p10 = scmp.ge.s32.totalorder %s9, 4
    %s19 = sphi 0, %s21
    %s22 = sphi 0, %s19
    %s23 = sphi 0, %s22
    %s39 = sphi 0, %s23
    %s43 = sphi 0, %s43
    %s45 = sphi 0, %s43
    %s46 = sphi 0, %s45
    %s60 = sphi 0, %s46
    %s64 = sphi 0, %s64
    %s66 = sphi 0, %s64
    %s67 = sphi 0, %s66
    %s81 = sphi 0, %s67
    %s87 = sphi 0, %s89
    %s90 = sphi 0, %s87
    %s91 = sphi 0, %s90
    %s107 = sphi 0, %s91
  $region4: #{conv_layer_forward.3} parent=0 // loop_header_branch
    %12 = sbr.rel (%p10) target = $region8
  $region5: #{conv_layer_forward.3} parent=0 // loop_body
    %s14 = ssub.s32 %s9, 1
    %s15 = ssub.s32 %s9, 2
    %s16 = sadd.s32 %s9, 1
    %s17 = ssub.s32 %s9, %s16
    %p18 = scmp.eq.s32.totalorder %s17, 0
    %s20 = sadd.s32 %s19, 1
    %s21 = scalar_select %p18, %s19, %s20
    %p24 = pneg %p18
    %p25 = scmp.eq.s32.totalorder %s9, 1
    %p26 = por %p24, %p25
    %p27 = scmp.ne.s32.totalorder %s19, %s22
    %p28 = scmp.eq.s32.totalorder %s9, 0
    %p29 = por %p27, %p28
    %p30 = scmp.ne.s32.totalorder %s19, %s22
    %p31 = scmp.eq.s32.totalorder %s14, 1
    %p32 = por %p30, %p31
    %p33 = scmp.ne.s32.totalorder %s22, %s23
    %p34 = scmp.eq.s32.totalorder %s14, 0
    %p35 = por %p33, %p34
    %p36 = scmp.ne.s32.totalorder %s22, %s23
    %p37 = scmp.eq.s32.totalorder %s15, 1
    %p38 = por %p36, %p37
    %p40 = scmp.ne.s32.totalorder %s23, %s39
    %p41 = scmp.eq.s32.totalorder %s15, 0
    %p42 = por %p40, %p41
    %s44 = sadd.s32 %s43, 1
    %p47 = scmp.eq.s32.totalorder %s9, 1
    %p48 = scmp.ne.s32.totalorder %s43, %s45
    %p49 = scmp.eq.s32.totalorder %s9, 0
    %p50 = por %p48, %p49
    %p51 = scmp.ne.s32.totalorder %s43, %s45
    %p52 = scmp.eq.s32.totalorder %s14, 1
    %p53 = por %p51, %p52
    %p54 = scmp.ne.s32.totalorder %s45, %s46
    %p55 = scmp.eq.s32.totalorder %s14, 0
    %p56 = por %p54, %p55
    %p57 = scmp.ne.s32.totalorder %s45, %s46
    %p58 = scmp.eq.s32.totalorder %s15, 1
    %p59 = por %p57, %p58
    %p61 = scmp.ne.s32.totalorder %s46, %s60
    %p62 = scmp.eq.s32.totalorder %s15, 0
    %p63 = por %p61, %p62
    %s65 = sadd.s32 %s64, 1
    %p68 = scmp.eq.s32.totalorder %s9, 1
    %p69 = scmp.ne.s32.totalorder %s64, %s66
    %p70 = scmp.eq.s32.totalorder %s9, 0
    %p71 = por %p69, %p70
    %p72 = scmp.ne.s32.totalorder %s64, %s66
    %p73 = scmp.eq.s32.totalorder %s14, 1
    %p74 = por %p72, %p73
    %p75 = scmp.ne.s32.totalorder %s66, %s67
    %p76 = scmp.eq.s32.totalorder %s14, 0
    %p77 = por %p75, %p76
    %p78 = scmp.ne.s32.totalorder %s66, %s67
    %p79 = scmp.eq.s32.totalorder %s15, 1
    %p80 = por %p78, %p79
    %p82 = scmp.ne.s32.totalorder %s67, %s81
    %p83 = scmp.eq.s32.totalorder %s15, 0
    %p84 = por %p82, %p83
    %s85 = ssub.s32 %s9, %s16
    %p86 = scmp.eq.s32.totalorder %s85, 0
    %s88 = sadd.s32 %s87, 1
    %s89 = scalar_select %p86, %s87, %s88
    %p92 = pneg %p86
    %p93 = scmp.eq.s32.totalorder %s9, 1
    %p94 = por %p92, %p93
    %p95 = scmp.ne.s32.totalorder %s87, %s90
    %p96 = scmp.eq.s32.totalorder %s9, 0
    %p97 = por %p95, %p96
    %p98 = scmp.ne.s32.totalorder %s87, %s90
    %p99 = scmp.eq.s32.totalorder %s14, 1
    %p100 = por %p98, %p99
    %p101 = scmp.ne.s32.totalorder %s90, %s91
    %p102 = scmp.eq.s32.totalorder %s14, 0
    %p103 = por %p101, %p102
    %p104 = scmp.ne.s32.totalorder %s90, %s91
    %p105 = scmp.eq.s32.totalorder %s15, 1
    %p106 = por %p104, %p105
    %p108 = scmp.ne.s32.totalorder %s91, %s107
    %p109 = scmp.eq.s32.totalorder %s15, 0
    %p110 = por %p108, %p109
    %p111 = scmp.le.s32.totalorder 1, %s9
    %p112 = scmp.lt.s32.totalorder %s9, 3
    %p113 = pnand %p111, %p112
    %p114 = pneg %p113
    // Predicated region
    $region9: #{conv_layer_forward.3} parent=5 // pred_check
      _
    $region10: #{conv_layer_forward.3} parent=5 // pred_check_branch
      %116 = sbr.rel (%p113) target = $region12
    $region11: #{conv_layer_forward.3} parent=5 // pred_region
      %s117 = ssub.s32 %s9, 1
      // Predicated region
      $region13: #{conv_layer_forward.3} parent=11 // pred_check
        %p118 = pneg %p56
      $region14: #{conv_layer_forward.3} parent=11 // pred_check_branch
        %120 = sbr.rel (%p118) target = $region16
      $region15: #{conv_layer_forward.3} parent=11 // pred_region
        _
      $region16: #{conv_layer_forward.3} parent=11 // pred_fallthru
        _
      // Predicated region
      $region17: #{conv_layer_forward.3} parent=11 // pred_check
        %p121 = pneg %p77
      $region18: #{conv_layer_forward.3} parent=11 // pred_check_branch
        %123 = sbr.rel (%p121) target = $region20
      $region19: #{conv_layer_forward.3} parent=11 // pred_region
        _
      $region20: #{conv_layer_forward.3} parent=11 // pred_fallthru
        _
    $region12: #{conv_layer_forward.3} parent=5 // pred_fallthru
      _
    %p124 = scmp.lt.s32.totalorder %s9, 2
    // Predicated region
    $region21: #{conv_layer_forward.3} parent=5 // pred_check
      %p125 = pneg %p124
    $region22: #{conv_layer_forward.3} parent=5 // pred_check_branch
      %127 = sbr.rel (%p125) target = $region24
    $region23: #{conv_layer_forward.3} parent=5 // pred_region
      // Predicated region
      $region25: #{conv_layer_forward.3} parent=23 // pred_check
        %p128 = pneg %p29
      $region26: #{conv_layer_forward.3} parent=23 // pred_check_branch
        %130 = sbr.rel (%p128) target = $region28
      $region27: #{conv_layer_forward.3} parent=23 // pred_region
        %p131 = scmp.lt.s32.totalorder %s9, 1
        %s132 = scalar_select %p131, %s9, 1
        %s133 = smul.addr %s132, 2
        %s134 = smul.addr %s133, 8
        %s135 = scalar_lea.vmem %s0, %s134
      $region28: #{conv_layer_forward.3} parent=23 // pred_fallthru
        _
    $region24: #{conv_layer_forward.3} parent=5 // pred_fallthru
      _
    %p136 = scmp.le.s32.totalorder 1, %s9
    %p137 = scmp.lt.s32.totalorder %s9, 3
    %p138 = pnand %p136, %p137
    %p139 = pneg %p138
    // Predicated region
    $region29: #{conv_layer_forward.3} parent=5 // pred_check
      _
    $region30: #{conv_layer_forward.3} parent=5 // pred_check_branch
      %141 = sbr.rel (%p138) target = $region32
    $region31: #{conv_layer_forward.3} parent=5 // pred_region
      %s142 = ssub.s32 %s9, 1
      %p143 = scmp.lt.s32.totalorder %s14, 1
      %s144 = scalar_select %p143, %s14, 1
      %s145 = smul.addr %s144, 2
      %s146 = smul.addr %s145, 8
      %s147 = scalar_lea.vmem %s0, %s146
      %p148 = pneg %p35
      %p149 = pneg %p32
      %p150 = pneg %p56
      %p151 = pneg %p53
      %p152 = pneg %p77
      %p153 = pneg %p74
      %p154 = pneg %p103
      %p155 = pneg %p100
      %p156 = scmp.lt.s32.totalorder %s14, 1
      %s157 = scalar_select %p156, %s14, 1
      %s158 = smul.addr %s157, 8
      %s159 = scalar_lea.vmem %s3, %s158
      %p160 = scmp.lt.s32.totalorder %s14, 1
      %s161 = scalar_select %p160, %s14, 1
      %s162 = smul.addr %s161, 2
      %s163 = smul.addr %s162, 8
      %s164 = scalar_lea.vmem %s0, %s163
      %p165 = scmp.lt.s32.totalorder %s14, 1
      %s166 = scalar_select %p165, %s14, 1
      %s167 = smul.addr %s166, 8
      %s168 = scalar_lea.vmem %s3, %s167
      %v169 = vld [vmem:[%s164] sm:$0xff]
      %v170 = vld [vmem:[%s164 + $0x8] sm:$0x3]
      %v171 = vld [vmem:[%s1] sm:$0x1]
      %v173 = vlaneseq
      %v174 = vshrl.u32 %v173, 7
      %v175 = vsub.s32 0, %v174
      %v176 = vrot.slane %v171, %v175
      %v178 = vmul.f32 %v169, %v176
      %v179 = vmul.f32 %v170, %v176
      %v180 = vld [vmem:[%s2] sm:$0x1]
      %v182 = vlaneseq
      %v183 = vshrl.u32 %v182, 7
      %v184 = vsub.s32 0, %v183
      %v185 = vrot.slane %v180, %v184
      %v187 = vadd.f32 %v178, %v185
      %v188 = vadd.f32 %v179, %v185
      %vm189 = vcmp.gt.f32.partialorder %v187, 0.0
      %vm190 = vcmp.gt.f32.partialorder %v188, 0.0
      %v191 = vmin.f32 %v187, 0.0
      %v192 = vmin.f32 %v188, 0.0
      %v193 = vmul.f32 %v191, 1.442695
      %v194 = vpow.pop %v193
      %v195 = vmul.f32 %v192, 1.442695
      %v196 = vpow.pop %v195
      %v197 = vsub.f32 %v194, 1.0
      %v198 = vsub.f32 %v196, 1.0
      %v199 = vsel %vm189, %v187, %v197
      %v200 = vsel %vm190, %v188, %v198
      %vm203 = vcmask 1040384
      %v204 = vrot.slane %v199, 7
      %v205 = vrot.slane %v200, 7
      %v206 = vsel %vm203, %v204, %v205
      %v209 = vsel %vm203, -inf, %v204
      %vm210 = vcmask 1042432
      %v211 = vsel %vm210, %v206, -inf
      %212 = vst [vmem:[#allocation2] sm:$0xff] %v209
      %213 = vst [vmem:[#allocation2 + $0x8] sm:$0xf] %v211
      %v214 = vld [vmem:[#allocation2] ss:$2 sm:$0x1f]
      %s215 = scalar_lea.vmem [#allocation2], 1
      %v216 = vld [vmem:[%s215] ss:$2 sm:$0x1f]
      %s217 = scalar_lea.vmem [#allocation2], 2
      %v218 = vld [vmem:[%s217] ss:$2 sm:$0x1f]
      %v219 = vmax.f32 %v214, %v216
      %v220 = vmax.f32 %v219, %v218
      %221 = vst [vmem:[%s168] sm:$0x1f] %v220
      %p222 = scmp.lt.s32.totalorder %s14, 1
      %s223 = scalar_select %p222, %s14, 1
      %s224 = smul.addr %s223, 8
      %s225 = scalar_lea.vmem %s3, %s224
      // Predicated region
      $region33: #{conv_layer_forward.3} parent=31 // pred_check
        %p226 = pneg %p100
      $region34: #{conv_layer_forward.3} parent=31 // pred_check_branch
        %228 = sbr.rel (%p226) target = $region36
      $region35: #{conv_layer_forward.3} parent=31 // pred_region
        _
      $region36: #{conv_layer_forward.3} parent=31 // pred_fallthru
        _
    $region32: #{conv_layer_forward.3} parent=5 // pred_fallthru
      _
    %p229 = scmp.le.s32.totalorder 2, %s9
    // Predicated region
    $region37: #{conv_layer_forward.3} parent=5 // pred_check
      %p230 = pneg %p229
    $region38: #{conv_layer_forward.3} parent=5 // pred_check_branch
      %232 = sbr.rel (%p230) target = $region40
    $region39: #{conv_layer_forward.3} parent=5 // pred_region
      %s233 = ssub.s32 %s9, 2
      // Predicated region
      $region41: #{conv_layer_forward.3} parent=39 // pred_check
        %p234 = pneg %p106
      $region42: #{conv_layer_forward.3} parent=39 // pred_check_branch
        %236 = sbr.rel (%p234) target = $region44
      $region43: #{conv_layer_forward.3} parent=39 // pred_region
        %p237 = scmp.lt.s32.totalorder %s15, 1
        %s238 = scalar_select %p237, %s15, 1
        %s239 = smul.addr %s238, 8
        %s240 = scalar_lea.vmem %s3, %s239
      $region44: #{conv_layer_forward.3} parent=39 // pred_fallthru
        _
    $region40: #{conv_layer_forward.3} parent=5 // pred_fallthru
      _
  $region6: #{conv_layer_forward.3} parent=0 // loop_footer
    %s13 = sadd.s32 1, %s9
  $region7: #{conv_layer_forward.3} parent=0 // loop_footer_branch
    %8 = sbr.rel target = $region3
  $region8: #{conv_layer_forward.3} parent=0 // loop_exit
    _

</llo_original>
